<compile_context>
chip_gen: v7x
topology: tpu7x:2x2x1
jax: 0.10.0
libtpu: 0.0.40
codegen_flags: <defaults>
</compile_context>

<pallas_src>
import functools

import jax
import jax.numpy as jnp
from jax.experimental import pallas as pl
from jax.experimental.pallas import tpu as pltpu


def _round_up(v, m):
    return ((v + m - 1) // m) * m


def _sublane_multiple(dtype):
    # Safe second-to-last block-dim multiple for the dtype's sublane packing.
    return {4: 8, 2: 16, 1: 32}.get(jnp.dtype(dtype).itemsize, 8)


def _vmem_budget_bytes():
    """Pick a scoped-VMEM limit appropriate for the current TPU generation."""
    cap = 0
    try:
        info = pltpu.get_tpu_info()
        cap = int(getattr(info, "vmem_capacity_bytes", 0))
    except Exception:
        cap = 0
    if cap >= 100 * 1024 * 1024:   # v4 / v5e / v6e: 128 MiB physical VMEM
        return 64 * 1024 * 1024
    if cap >= 60 * 1024 * 1024:    # v7x: 64 MiB per TensorCore
        return 40 * 1024 * 1024
    if cap > 0:                    # anything smaller: stay well under capacity
        return max(cap // 2, 8 * 1024 * 1024)
    return 40 * 1024 * 1024        # unknown: conservative default


def _bce_partial_kernel(x_ref, y_ref, o_ref, *, num_tiles, valid_rows_last):
    """Per-tile partial sums of BCEWithLogits(pos_weight=[0,1,..,1]) elements.

    x_ref, y_ref: (TR, C) row tiles of logits / labels in their natural layout.
    o_ref:        (8, C) per-tile partial-sum slab (summed later in JAX).
    """
    x = x_ref[...].astype(jnp.float32)
    y = y_ref[...].astype(jnp.float32)
    tr, c = x.shape

    # Numerically stable softplus(x) = max(x, 0) + log1p(exp(-|x|)).
    sp = jnp.maximum(x, 0.0) + jnp.log1p(jnp.exp(-jnp.abs(x)))

    # pos_weight[0] = 0:
    #   col == 0 : (1 - y) * softplus(x)              = sp - y * sp
    #   col  > 0 : y*softplus(-x) + (1-y)*softplus(x) = sp - y * x
    col = jax.lax.broadcasted_iota(jnp.int32, (tr, c), 1)
    loss = sp - y * jnp.where(col == 0, sp, x)

    def fold(v):
        # (TR, C) -> (8, C): free leading-dim split + sublane-aligned vreg adds.
        return v.reshape(tr // 8, 8, c).sum(axis=0)

    if valid_rows_last == tr:
        # Every tile is full: no masking anywhere.
        o_ref[...] = fold(loss)
    else:
        i = pl.program_id(0)
        last = num_tiles - 1

        @pl.when(i != last)
        def _():
            o_ref[...] = fold(loss)

        @pl.when(i == last)  # only the ragged tail pays for the row mask
        def _():
            row = jax.lax.broadcasted_iota(jnp.int32, (tr, c), 0)
            o_ref[...] = fold(jnp.where(row < valid_rows_last, loss, 0.0))


def _ce_sum_kernel(x_ref, y_ref, o_ref):
    # Cold path (num_classes <= 2): whole-array block, tiny workload.
    x = x_ref[...].astype(jnp.float32)
    y = y_ref[...].astype(jnp.float32)
    n, c = x.shape
    iota = jax.lax.broadcasted_iota(jnp.int32, (n, c), 1)
    # first-max argmax (matches torch.argmax tie-breaking) without gather
    ymax = jnp.max(y, axis=1, keepdims=True)
    masked_iota = jnp.where(y == ymax, iota, c)
    tgt = jnp.min(masked_iota, axis=1, keepdims=True)
    onehot = (iota == tgt).astype(jnp.float32)
    # stable log-softmax
    xmax = jnp.max(x, axis=1, keepdims=True)
    lse = jnp.log(jnp.sum(jnp.exp(x - xmax), axis=1, keepdims=True)) + xmax
    logp = x - lse
    per_row = -jnp.sum(logp * onehot, axis=1)
    o_ref[...] = jnp.sum(per_row).reshape(1, 1)


def at_loss(logits, labels, *, max_tile_rows=None):
    """ATLoss.forward (== get_entropy_loss). Returns scalar float32 loss."""
    N, C = logits.shape
    if C > 2:
        vmem_limit = _vmem_budget_bytes()
        sub = max(_sublane_multiple(logits.dtype), _sublane_multiple(labels.dtype))

        # Size row tiles by lane-padded VMEM footprint of the double-buffered
        # x / y input streams; keep them to ~1/4 of the scoped limit so the
        # elementwise f32 temporaries fit comfortably alongside.
        lanes = _round_up(C, 128)
        itemsz = jnp.dtype(logits.dtype).itemsize + jnp.dtype(labels.dtype).itemsize
        per_row_bytes = 2 * lanes * itemsz                     # 2 = double buffer
        cap_rows = max(sub, ((vmem_limit // 4) // per_row_bytes) // sub * sub)
        if max_tile_rows is not None:
            cap_rows = min(cap_rows, max(sub, _round_up(max_tile_rows, sub)))
        # >= 2 tiles whenever N allows -> megacore sharding of the parallel grid.
        tn = max(sub, min(cap_rows,
                          _round_up(pl.cdiv(N, 2), sub),
                          _round_up(N, sub)))
        num_tiles = pl.cdiv(N, tn)
        valid_rows_last = N - (num_tiles - 1) * tn

        partials = pl.pallas_call(
            functools.partial(_bce_partial_kernel, num_tiles=num_tiles,
                              valid_rows_last=valid_rows_last),
            out_shape=jax.ShapeDtypeStruct((num_tiles * 8, C), jnp.float32),
            grid=(num_tiles,),
            in_specs=[
                pl.BlockSpec((tn, C), lambda i: (i, 0)),
                pl.BlockSpec((tn, C), lambda i: (i, 0)),
            ],
            out_specs=pl.BlockSpec((8, C), lambda i: (i, 0)),
            compiler_params=pltpu.CompilerParams(
                dimension_semantics=("parallel",),
                vmem_limit_bytes=vmem_limit,
            ),
        )(logits, labels)
        # BCE reduction='mean' over N*C elements, then torch.sum(scalar) / C.
        return jnp.sum(partials) / jnp.float32(N * C) / jnp.float32(C)
    else:
        # TODO(synk): cold path (num_classes <= 2) kept as one whole-array
        # block; tile over N like the hot path if ever hit with very large N.
        total = pl.pallas_call(
            _ce_sum_kernel,
            out_shape=jax.ShapeDtypeStruct((1, 1), jnp.float32),
            grid=(1,),
            in_specs=[
                pl.BlockSpec((N, C), lambda i: (0, 0)),
                pl.BlockSpec((N, C), lambda i: (0, 0)),
            ],
            out_specs=pl.BlockSpec((1, 1), lambda i: (0, 0)),
            compiler_params=pltpu.CompilerParams(
                dimension_semantics=("arbitrary",),
                vmem_limit_bytes=32 * 1024 * 1024,
            ),
        )(logits, labels)
        return total[0, 0] / jnp.float32(N)


if __name__ == "__main__":
    key = jax.random.PRNGKey(0)
    k1, k2 = jax.random.split(key)

    def softplus(t):
        return jnp.maximum(t, 0.0) + jnp.log1p(jnp.exp(-jnp.abs(t)))

    def bce_ref(x, y):
        c = x.shape[-1]
        pw = jnp.ones((c,), jnp.float32).at[0].set(0.0)
        x = x.astype(jnp.float32)
        y = y.astype(jnp.float32)
        elem = pw * y * softplus(-x) + (1.0 - y) * softplus(x)
        return jnp.mean(elem) / c

    def close(a, b, tol=1e-5):
        a = float(a); b = float(b)
        return abs(a - b) <= tol * max(1.0, abs(b))

    # 1) BCE branch, small C, two full row tiles (exercises the parallel grid).
    N1, C1 = 16, 8
    logits1 = jax.random.normal(k1, (N1, C1), dtype=jnp.float32)
    labels1 = (jax.random.uniform(k2, (N1, C1)) > 0.5).astype(jnp.float32)
    out1 = jax.block_until_ready(jax.jit(at_loss)(logits1, labels1))
    ref1 = bce_ref(logits1, labels1)
    assert close(out1, ref1), (float(out1), float(ref1))

    # 2) BCE branch: multi-tile with ragged last tile (250 % 64 != 0),
    #    bf16 labels, C not a multiple of 128.
    N2, C2 = 250, 37
    logits2 = jax.random.normal(k1, (N2, C2), dtype=jnp.float32)
    labels2 = (jax.random.uniform(k2, (N2, C2)) > 0.5).astype(jnp.bfloat16)
    fn2 = jax.jit(lambda a, b: at_loss(a, b, max_tile_rows=64))
    out2 = jax.block_until_ready(fn2(logits2, labels2))
    ref2 = bce_ref(logits2, labels2)
    assert close(out2, ref2), (float(out2), float(ref2))

    # 3) BCE branch with C > 128 (lane dim spans multiple vregs).
    N3, C3 = 64, 200
    logits3 = jax.random.normal(k1, (N3, C3), dtype=jnp.float32)
    labels3 = (jax.random.uniform(k2, (N3, C3)) > 0.5).astype(jnp.float32)
    out3 = jax.block_until_ready(jax.jit(at_loss)(logits3, labels3))
    ref3 = bce_ref(logits3, labels3)
    assert close(out3, ref3), (float(out3), float(ref3))

    # 4) CrossEntropy branch (num_classes <= 2).
    N4 = 16
    logits4 = jax.random.normal(k1, (N4, 2), dtype=jnp.float32)
    labels4 = jax.nn.one_hot(jax.random.randint(k2, (N4,), 0, 2), 2,
                             dtype=jnp.float32)
    out4 = jax.block_until_ready(jax.jit(at_loss)(logits4, labels4))
    lse4 = jax.nn.logsumexp(logits4, axis=1)
    ref4 = jnp.mean(lse4 - jnp.sum(logits4 * labels4, axis=1))
    assert close(out4, ref4), (float(out4), float(ref4))

    print("KERNEL_OK")
</pallas_src>

<mosaic_0001>
module attributes {stable_mosaic.version = 11 : i64} {
  func.func @_bce_partial_kernel(%arg0: i32, %arg1: memref<8x8xf32, #tpu.memory_space<vmem>>, %arg2: memref<8x8xf32, #tpu.memory_space<vmem>>, %arg3: memref<8x8xf32, #tpu.memory_space<vmem>>) attributes {dimension_semantics = [#tpu.dimension_semantics<parallel>], iteration_bounds = array<i64: 2>, scalar_prefetch = 0 : i64, scratch_operands = 0 : i64, tpu.core_type = #tpu.core_type<tc>, window_params = [{transform_indices = @transform_0, window_bounds = array<i64: 8, 8>}, {transform_indices = @transform_1, window_bounds = array<i64: 8, 8>}, {transform_indices = @transform_2, window_bounds = array<i64: 8, 8>}]} {
    %c0 = arith.constant 0 : index
    %c0_0 = arith.constant 0 : index
    %0 = vector.load %arg1[%c0, %c0_0] : memref<8x8xf32, #tpu.memory_space<vmem>>, vector<8x8xf32>
    %c0_1 = arith.constant 0 : index
    %c0_2 = arith.constant 0 : index
    %1 = vector.load %arg2[%c0_1, %c0_2] : memref<8x8xf32, #tpu.memory_space<vmem>>, vector<8x8xf32>
    %cst = arith.constant 0.000000e+00 : f32
    %2 = vector.broadcast %cst : f32 to vector<8x8xf32>
    %3 = arith.maximumf %0, %2 : vector<8x8xf32>
    %4 = math.absf %0 : vector<8x8xf32>
    %cst_3 = arith.constant 0.000000e+00 : f32
    %5 = vector.broadcast %cst_3 : f32 to vector<8x8xf32>
    %6 = arith.subf %5, %4 : vector<8x8xf32>
    %7 = math.exp %6 : vector<8x8xf32>
    %8 = math.log1p %7 : vector<8x8xf32>
    %9 = arith.addf %3, %8 : vector<8x8xf32>
    %10 = tpu.iota {dimensions = array<i32: 1>} : vector<8x8xi32>
    %c0_i32 = arith.constant 0 : i32
    %11 = vector.broadcast %c0_i32 : i32 to vector<8x8xi32>
    %12 = arith.cmpi eq, %10, %11 : vector<8x8xi32>
    %13 = arith.select %12, %9, %0 : vector<8x8xi1>, vector<8x8xf32>
    %14 = arith.mulf %1, %13 : vector<8x8xf32>
    %15 = arith.subf %9, %14 : vector<8x8xf32>
    %16 = vector.shape_cast %15 : vector<8x8xf32> to vector<1x8x8xf32>
    %cst_4 = arith.constant dense<0.000000e+00> : vector<8x8xf32>
    %17 = vector.multi_reduction <add>, %16, %cst_4 [0] : vector<1x8x8xf32> to vector<8x8xf32>
    %c0_5 = arith.constant 0 : index
    %c0_6 = arith.constant 0 : index
    %18 = vector.load %arg3[%c0_5, %c0_6] : memref<8x8xf32, #tpu.memory_space<vmem>>, vector<8x8xf32>
    tpu.vector_store %arg3[%c0_5, %c0_6], %17 {strides = array<i32>} : memref<8x8xf32, #tpu.memory_space<vmem>>, vector<8x8xf32>,
    return
  }
  func.func @transform_0(%arg0: i32) -> (i32, i32) {
    %c0_i32 = arith.constant 0 : i32
    %c0_i32_0 = arith.constant 0 : i32
    return %arg0, %c0_i32 : i32, i32
  }
  func.func @transform_1(%arg0: i32) -> (i32, i32) {
    %c0_i32 = arith.constant 0 : i32
    %c0_i32_0 = arith.constant 0 : i32
    return %arg0, %c0_i32 : i32, i32
  }
  func.func @transform_2(%arg0: i32) -> (i32, i32) {
    %c0_i32 = arith.constant 0 : i32
    %c0_i32_0 = arith.constant 0 : i32
    return %arg0, %c0_i32 : i32, i32
  }
}

</mosaic_0001>

<llo_original>
// kernel: at_loss.1
$region0: #{at_loss.1}
  #allocation0 [shape = 'u32[]', space=smem, size = 0x4, offset = 0x4, fixed_abs, tag = 'smem constant byte address 0x4 - core index']
  #allocation1 [shape = 'u32[144,128]{1,0:T(1,128)}', space=vmem, size = 0x12000, scoped, tag = 'internal scratch']
  %s0 = inlined_call_operand.vmem [shape: f32[16,8], index: 0, kind: input, shape index: {}]
  %s1 = inlined_call_operand.vmem [shape: f32[16,8], index: 1, kind: input, shape index: {}]
  %s2 = inlined_call_operand.vmem [shape: f32[16,8], index: 2, kind: output, shape index: {}]
  %s3 = sld [smem:[#allocation0]]
  $region41: #{at_loss.1} parent=0
    _
  %s5 = ssub.s32 1, %s3
  %s6 = scalar_select 0, %s5, %s3
  loop: start=0, step=1, limit=4
  $region2: #{at_loss.1} parent=0 // loop_pre_header
    _
  $region3: #{at_loss.1} parent=0 // loop_header
    %s8 = sphi 0, %s12
    %p9 = scmp.ge.s32.totalorder %s8, 4
    %s18 = sphi 0, %s20
    %s21 = sphi 0, %s18
    %s22 = sphi 0, %s21
    %s38 = sphi 0, %s22
    %s44 = sphi 0, %s46
    %s47 = sphi 0, %s44
    %s48 = sphi 0, %s47
    %s64 = sphi 0, %s48
    %s70 = sphi 0, %s72
    %s73 = sphi 0, %s70
    %s74 = sphi 0, %s73
    %s90 = sphi 0, %s74
  $region4: #{at_loss.1} parent=0 // loop_header_branch
    %11 = sbr.rel (%p9) target = $region8
  $region5: #{at_loss.1} parent=0 // loop_body
    %s13 = ssub.s32 %s8, 1
    %s14 = ssub.s32 %s8, 2
    %s15 = sadd.s32 %s8, 1
    %s16 = ssub.s32 %s8, %s15
    %p17 = scmp.eq.s32.totalorder %s16, 0
    %s19 = sadd.s32 %s18, 1
    %s20 = scalar_select %p17, %s18, %s19
    %p23 = pneg %p17
    %p24 = scmp.eq.s32.totalorder %s8, 1
    %p25 = por %p23, %p24
    %p26 = scmp.ne.s32.totalorder %s18, %s21
    %p27 = scmp.eq.s32.totalorder %s8, 0
    %p28 = por %p26, %p27
    %p29 = scmp.ne.s32.totalorder %s18, %s21
    %p30 = scmp.eq.s32.totalorder %s13, 1
    %p31 = por %p29, %p30
    %p32 = scmp.ne.s32.totalorder %s21, %s22
    %p33 = scmp.eq.s32.totalorder %s13, 0
    %p34 = por %p32, %p33
    %p35 = scmp.ne.s32.totalorder %s21, %s22
    %p36 = scmp.eq.s32.totalorder %s14, 1
    %p37 = por %p35, %p36
    %p39 = scmp.ne.s32.totalorder %s22, %s38
    %p40 = scmp.eq.s32.totalorder %s14, 0
    %p41 = por %p39, %p40
    %s42 = ssub.s32 %s8, %s15
    %p43 = scmp.eq.s32.totalorder %s42, 0
    %s45 = sadd.s32 %s44, 1
    %s46 = scalar_select %p43, %s44, %s45
    %p49 = pneg %p43
    %p50 = scmp.eq.s32.totalorder %s8, 1
    %p51 = por %p49, %p50
    %p52 = scmp.ne.s32.totalorder %s44, %s47
    %p53 = scmp.eq.s32.totalorder %s8, 0
    %p54 = por %p52, %p53
    %p55 = scmp.ne.s32.totalorder %s44, %s47
    %p56 = scmp.eq.s32.totalorder %s13, 1
    %p57 = por %p55, %p56
    %p58 = scmp.ne.s32.totalorder %s47, %s48
    %p59 = scmp.eq.s32.totalorder %s13, 0
    %p60 = por %p58, %p59
    %p61 = scmp.ne.s32.totalorder %s47, %s48
    %p62 = scmp.eq.s32.totalorder %s14, 1
    %p63 = por %p61, %p62
    %p65 = scmp.ne.s32.totalorder %s48, %s64
    %p66 = scmp.eq.s32.totalorder %s14, 0
    %p67 = por %p65, %p66
    %s68 = ssub.s32 %s8, %s15
    %p69 = scmp.eq.s32.totalorder %s68, 0
    %s71 = sadd.s32 %s70, 1
    %s72 = scalar_select %p69, %s70, %s71
    %p75 = pneg %p69
    %p76 = scmp.eq.s32.totalorder %s8, 1
    %p77 = por %p75, %p76
    %p78 = scmp.ne.s32.totalorder %s70, %s73
    %p79 = scmp.eq.s32.totalorder %s8, 0
    %p80 = por %p78, %p79
    %p81 = scmp.ne.s32.totalorder %s70, %s73
    %p82 = scmp.eq.s32.totalorder %s13, 1
    %p83 = por %p81, %p82
    %p84 = scmp.ne.s32.totalorder %s73, %s74
    %p85 = scmp.eq.s32.totalorder %s13, 0
    %p86 = por %p84, %p85
    %p87 = scmp.ne.s32.totalorder %s73, %s74
    %p88 = scmp.eq.s32.totalorder %s14, 1
    %p89 = por %p87, %p88
    %p91 = scmp.ne.s32.totalorder %s74, %s90
    %p92 = scmp.eq.s32.totalorder %s14, 0
    %p93 = por %p91, %p92
    %p94 = scmp.le.s32.totalorder 1, %s8
    %p95 = scmp.lt.s32.totalorder %s8, 3
    %p96 = pnand %p94, %p95
    %p97 = pneg %p96
    // Predicated region
    $region9: #{at_loss.1} parent=5 // pred_check
      _
    $region10: #{at_loss.1} parent=5 // pred_check_branch
      %99 = sbr.rel (%p96) target = $region12
    $region11: #{at_loss.1} parent=5 // pred_region
      %s100 = ssub.s32 %s8, 1
    $region12: #{at_loss.1} parent=5 // pred_fallthru
      _
    %p101 = scmp.lt.s32.totalorder %s8, 2
    // Predicated region
    $region13: #{at_loss.1} parent=5 // pred_check
      %p102 = pneg %p101
    $region14: #{at_loss.1} parent=5 // pred_check_branch
      %104 = sbr.rel (%p102) target = $region16
    $region15: #{at_loss.1} parent=5 // pred_region
      // Predicated region
      $region17: #{at_loss.1} parent=15 // pred_check
        %p105 = pneg %p28
      $region18: #{at_loss.1} parent=15 // pred_check_branch
        %107 = sbr.rel (%p105) target = $region20
      $region19: #{at_loss.1} parent=15 // pred_region
        %p108 = scmp.lt.s32.totalorder %s8, 1
        %s109 = scalar_select %p108, %s8, 1
        %s110 = smul.addr %s109, 8
        %s111 = scalar_lea.vmem %s0, %s110
      $region20: #{at_loss.1} parent=15 // pred_fallthru
        _
      // Predicated region
      $region21: #{at_loss.1} parent=15 // pred_check
        %p112 = pneg %p54
      $region22: #{at_loss.1} parent=15 // pred_check_branch
        %114 = sbr.rel (%p112) target = $region24
      $region23: #{at_loss.1} parent=15 // pred_region
        %p115 = scmp.lt.s32.totalorder %s8, 1
        %s116 = scalar_select %p115, %s8, 1
        %s117 = smul.addr %s116, 8
        %s118 = scalar_lea.vmem %s1, %s117
      $region24: #{at_loss.1} parent=15 // pred_fallthru
        _
    $region16: #{at_loss.1} parent=5 // pred_fallthru
      _
    %p119 = scmp.le.s32.totalorder 1, %s8
    %p120 = scmp.lt.s32.totalorder %s8, 3
    %p121 = pnand %p119, %p120
    %p122 = pneg %p121
    // Predicated region
    $region25: #{at_loss.1} parent=5 // pred_check
      _
    $region26: #{at_loss.1} parent=5 // pred_check_branch
      %124 = sbr.rel (%p121) target = $region28
    $region27: #{at_loss.1} parent=5 // pred_region
      %s125 = ssub.s32 %s8, 1
      %p126 = scmp.lt.s32.totalorder %s13, 1
      %s127 = scalar_select %p126, %s13, 1
      %s128 = smul.addr %s127, 8
      %s129 = scalar_lea.vmem %s0, %s128
      %p130 = pneg %p34
      %p131 = pneg %p31
      %p132 = scmp.lt.s32.totalorder %s13, 1
      %s133 = scalar_select %p132, %s13, 1
      %s134 = smul.addr %s133, 8
      %s135 = scalar_lea.vmem %s1, %s134
      %p136 = pneg %p60
      %p137 = pneg %p57
      %p138 = pneg %p86
      %p139 = pneg %p83
      %p140 = scmp.lt.s32.totalorder %s13, 1
      %s141 = scalar_select %p140, %s13, 1
      %s142 = smul.addr %s141, 8
      %s143 = scalar_lea.vmem %s2, %s142
      %p144 = scmp.lt.s32.totalorder %s13, 1
      %s145 = scalar_select %p144, %s13, 1
      %s146 = smul.addr %s145, 8
      %s147 = scalar_lea.vmem %s0, %s146
      %p148 = scmp.lt.s32.totalorder %s13, 1
      %s149 = scalar_select %p148, %s13, 1
      %s150 = smul.addr %s149, 8
      %s151 = scalar_lea.vmem %s1, %s150
      %p152 = scmp.lt.s32.totalorder %s13, 1
      %s153 = scalar_select %p152, %s13, 1
      %s154 = smul.addr %s153, 8
      %s155 = scalar_lea.vmem %s2, %s154
      %v156 = vld [vmem:[%s147] sm:$0xff]
      %v157 = vld [vmem:[%s151] sm:$0xff]
      %v158 = vmax.f32 %v156, 0.0
      %v159 = vand.u32 2147483647, %v156
      %v160 = vsub.f32 0.0, %v159
      %v161 = vmul.f32 %v160, 1.442695
      %v162 = vpow.pop %v161
      %v163 = vadd.f32 %v162, 1.0
      %v164 = vlog2.pop %v163
      %v165 = vmul.f32 %v164, 0.6931472
      %v166 = vmul.f32 -0.5, %v162
      %v167 = vadd.f32 %v166, 1.0
      %v168 = vmul.f32 %v167, %v162
      %v169 = vand.u32 2147483647, %v162
      %vm170 = vcmp.lt.f32.partialorder %v169, 0.0004427343
      %v171 = vsel %vm170, %v168, %v165
      %v172 = vadd.f32 %v158, %v171
      %v173 = vlaneseq
      %v174 = vand.u32 %v173, 127
      %vm175 = vcmp.eq.s32.totalorder %v174, 0
      %v176 = vsel %vm175, %v172, %v156
      %v177 = vmul.f32 %v157, %v176
      %v178 = vsub.f32 %v172, %v177
      %v179 = vadd.f32 %v178, 0.0
      %vm180 = vcmask 64512
      %181 = vst.msk [vmem:[%s155] sm:$0xff] %vm180, %v179
      %p182 = scmp.lt.s32.totalorder %s13, 1
      %s183 = scalar_select %p182, %s13, 1
      %s184 = smul.addr %s183, 8
      %s185 = scalar_lea.vmem %s2, %s184
      // Predicated region
      $region29: #{at_loss.1} parent=27 // pred_check
        %p186 = pneg %p83
      $region30: #{at_loss.1} parent=27 // pred_check_branch
        %188 = sbr.rel (%p186) target = $region32
      $region31: #{at_loss.1} parent=27 // pred_region
        _
      $region32: #{at_loss.1} parent=27 // pred_fallthru
        _
    $region28: #{at_loss.1} parent=5 // pred_fallthru
      _
    %p189 = scmp.le.s32.totalorder 2, %s8
    // Predicated region
    $region33: #{at_loss.1} parent=5 // pred_check
      %p190 = pneg %p189
    $region34: #{at_loss.1} parent=5 // pred_check_branch
      %192 = sbr.rel (%p190) target = $region36
    $region35: #{at_loss.1} parent=5 // pred_region
      %s193 = ssub.s32 %s8, 2
      // Predicated region
      $region37: #{at_loss.1} parent=35 // pred_check
        %p194 = pneg %p89
      $region38: #{at_loss.1} parent=35 // pred_check_branch
        %196 = sbr.rel (%p194) target = $region40
      $region39: #{at_loss.1} parent=35 // pred_region
        %p197 = scmp.lt.s32.totalorder %s14, 1
        %s198 = scalar_select %p197, %s14, 1
        %s199 = smul.addr %s198, 8
        %s200 = scalar_lea.vmem %s2, %s199
      $region40: #{at_loss.1} parent=35 // pred_fallthru
        _
    $region36: #{at_loss.1} parent=5 // pred_fallthru
      _
  $region6: #{at_loss.1} parent=0 // loop_footer
    %s12 = sadd.s32 1, %s8
  $region7: #{at_loss.1} parent=0 // loop_footer_branch
    %7 = sbr.rel target = $region3
  $region8: #{at_loss.1} parent=0 // loop_exit
    _

</llo_original>
